<compile_context>
chip_gen: v7x
topology: tpu7x:2x2x1
jax: 0.10.0
libtpu: 0.0.40
codegen_flags: <defaults>
</compile_context>

<pallas_src>
import jax
import jax.numpy as jnp
from jax import lax
from jax.experimental import pallas as pl
from jax.experimental.pallas import tpu as pltpu
import numpy as np


_UNROLL_MAX = 32  # full static unroll (no scratch) up to this many time steps


def _sigmoid(x):
    # Exact sigmoid: one EUP exp + one reciprocal. approx=True would move the
    # divide onto the EUP approx path but fails the 1e-5 reference tolerance.
    return pl.reciprocal(1.0 + jnp.exp(-x), approx=False)


# --------------------------------------------------------------------------
# Merged kernel (v6e / v7x): one block-diagonal recurrent matmul per step.
# --------------------------------------------------------------------------
def bilstm_max_fused_kernel(x2_ref, wih_ref, whh_ref, b_ref, h0_ref, c0_ref,
                            out_ref, *scratch):
    """x2:(S,2D) row t=[x[t]|x[S-1-t]]; wih:(2D,8H); whh:(2H,8H) block-diag;
    b:(1,8H); h0/c0:(1,2H); out:(1,2H). Gate columns: [i|f|o|g] x [fwd|bwd]."""
    S = x2_ref.shape[0]
    H2 = h0_ref.shape[-1]            # 2*hidden
    whh = whh_ref[...]               # hoisted recurrent weight (2H, 8H)

    def cell(gates, h, c, m):
        sig = _sigmoid(gates[:, :3 * H2])   # one EUP group for i, f, o
        g = jnp.tanh(gates[:, 3 * H2:])     # one EUP group for g
        i = sig[:, 0:H2]
        f = sig[:, H2:2 * H2]
        o = sig[:, 2 * H2:3 * H2]
        c_new = f * c + i * g
        h_new = o * jnp.tanh(c_new)
        return h_new, c_new, jnp.maximum(m, h_new)

    h = h0_ref[...]
    c = c0_ref[...]
    m = jnp.full((1, H2), -jnp.inf, dtype=jnp.float32)

    if S <= _UNROLL_MAX:
        # Value path: no VMEM round trip, static row slices, full unroll.
        xp = jnp.dot(x2_ref[...], wih_ref[...],
                     preferred_element_type=jnp.float32) + b_ref[...]
        for t in range(S):
            gates = xp[t:t + 1, :] + jnp.dot(
                h, whh, preferred_element_type=jnp.float32)
            h, c, m = cell(gates, h, c, m)
    else:
        xp_ref, = scratch
        xp_ref[...] = jnp.dot(x2_ref[...], wih_ref[...],
                              preferred_element_type=jnp.float32) + b_ref[...]

        def body(t, carry):
            h, c, m = carry
            gates = xp_ref[pl.ds(t, 1), :] + jnp.dot(
                h, whh, preferred_element_type=jnp.float32)
            return cell(gates, h, c, m)

        h, c, m = lax.fori_loop(0, S, body, (h, c, m), unroll=8)

    out_ref[...] = m


# --------------------------------------------------------------------------
# Split-directions kernel (v5e): two (1,H)@(H,4H) recurrent matmuls per step,
# each a single 128x128 MXU tile, no half-zero block-diagonal weight.
# --------------------------------------------------------------------------
def bilstm_max_split_kernel(x2_ref, wih_ref, whhf_ref, whhb_ref, b_ref,
                            h0_ref, c0_ref, out_ref, *scratch):
    """x2:(S,2D); wih:(2D,8H) block-diag, cols [fwd i f o g | bwd i f o g];
    whhf/whhb:(H,4H) cols [i f o g]; b:(1,8H); h0/c0:(1,2H); out:(1,2H)."""
    S = x2_ref.shape[0]
    H = whhf_ref.shape[0]
    H4 = 4 * H
    whh_f = whhf_ref[...]
    whh_b = whhb_ref[...]

    def cell_dir(g, c):
        sig = _sigmoid(g[:, :3 * H])
        gg = jnp.tanh(g[:, 3 * H:])
        i = sig[:, 0:H]
        f = sig[:, H:2 * H]
        o = sig[:, 2 * H:3 * H]
        c_new = f * c + i * gg
        h_new = o * jnp.tanh(c_new)
        return h_new, c_new

    h0 = h0_ref[...]
    c0 = c0_ref[...]
    hf, hb = h0[:, :H], h0[:, H:]
    cf, cb = c0[:, :H], c0[:, H:]
    mf = jnp.full((1, H), -jnp.inf, dtype=jnp.float32)
    mb = jnp.full((1, H), -jnp.inf, dtype=jnp.float32)

    def step_from_row(xrow, carry):
        hf, cf, mf, hb, cb, mb = carry
        gf = xrow[:, :H4] + jnp.dot(hf, whh_f, preferred_element_type=jnp.float32)
        gb = xrow[:, H4:] + jnp.dot(hb, whh_b, preferred_element_type=jnp.float32)
        hf, cf = cell_dir(gf, cf)
        hb, cb = cell_dir(gb, cb)
        return hf, cf, jnp.maximum(mf, hf), hb, cb, jnp.maximum(mb, hb)

    carry = (hf, cf, mf, hb, cb, mb)
    if S <= _UNROLL_MAX:
        xp = jnp.dot(x2_ref[...], wih_ref[...],
                     preferred_element_type=jnp.float32) + b_ref[...]
        for t in range(S):
            carry = step_from_row(xp[t:t + 1, :], carry)
    else:
        xp_ref, = scratch
        xp_ref[...] = jnp.dot(x2_ref[...], wih_ref[...],
                              preferred_element_type=jnp.float32) + b_ref[...]

        def body(t, carry):
            return step_from_row(xp_ref[pl.ds(t, 1), :], carry)

        carry = lax.fori_loop(0, S, body, carry, unroll=8)

    hf, cf, mf, hb, cb, mb = carry
    out_ref[...] = jnp.concatenate([mf, mb], axis=-1)


# --------------------------------------------------------------------------
# Weight layout plumbing (one-time XLA work in the wrapper).
# --------------------------------------------------------------------------
def _regroup_cols(w_t_f, w_t_b):
    """Block-structured weight with columns [i_f i_b f_f f_b o_f o_b g_f g_b].
    Inputs: per-direction (K, 4H) transposed weights in PyTorch gate order
    (i, f, g, o). Fwd rows feed only fwd columns, bwd rows only bwd columns."""
    i_f, f_f, g_f, o_f = jnp.split(w_t_f, 4, axis=-1)
    i_b, f_b, g_b, o_b = jnp.split(w_t_b, 4, axis=-1)
    zf = jnp.zeros_like(i_f)
    zb = jnp.zeros_like(i_b)
    top = jnp.concatenate([i_f, zf, f_f, zf, o_f, zf, g_f, zf], axis=-1)
    bot = jnp.concatenate([zb, i_b, zb, f_b, zb, o_b, zb, g_b], axis=-1)
    return jnp.concatenate([top, bot], axis=0)


def _regroup_bias(b_f, b_b):
    i_f, f_f, g_f, o_f = jnp.split(b_f, 4)
    i_b, f_b, g_b, o_b = jnp.split(b_b, 4)
    return jnp.concatenate([i_f, i_b, f_f, f_b, o_f, o_b, g_f, g_b])[None, :]


def _reorder_ifog(w):
    """PyTorch gate order (i,f,g,o) -> kernel order (i,f,o,g) along last axis."""
    i, f, g, o = jnp.split(w, 4, axis=-1)
    return jnp.concatenate([i, f, o, g], axis=-1)


def _is_v5e():
    try:
        kind = jax.devices()[0].device_kind.lower()
    except Exception:
        return False
    kind_nospace = kind.replace(" ", "")
    return ("v5e" in kind_nospace) or ("v5lite" in kind_nospace)


# --------------------------------------------------------------------------
# Wrapper
# --------------------------------------------------------------------------
def step_model_forward(data, w_ih, w_hh, b_ih, b_hh, h0, c0,
                       *, split_directions=None):
    """data:(S,D); w_ih:(2,4H,D); w_hh:(2,4H,H); b_*:(2,4H); h0/c0:(2,1,H).
    Returns (1, 2H) = torch.max(BiLSTM output, dim=0)[0]."""
    S, D = data.shape
    H = h0.shape[-1]
    if split_directions is None:
        split_directions = _is_v5e()   # merged matmul on v6e/v7x, split on v5e

    # Row t of x2 = [x[t] | x[S-1-t]]: one matmul yields both directions'
    # time-aligned input projections.
    x2 = jnp.concatenate([data, data[::-1]], axis=-1)          # (S, 2D)
    h0_cat = jnp.concatenate([h0[0], h0[1]], axis=-1)          # (1, 2H)
    c0_cat = jnp.concatenate([c0[0], c0[1]], axis=-1)          # (1, 2H)

    vmem = pl.BlockSpec(memory_space=pltpu.MemorySpace.VMEM)
    scratch = [] if S <= _UNROLL_MAX else [pltpu.VMEM((S, 8 * H), jnp.float32)]
    out_shape = jax.ShapeDtypeStruct((1, 2 * H), jnp.float32)

    if not split_directions:
        wih_cat = _regroup_cols(jnp.transpose(w_ih[0]), jnp.transpose(w_ih[1]))  # (2D,8H)
        whh_cat = _regroup_cols(jnp.transpose(w_hh[0]), jnp.transpose(w_hh[1]))  # (2H,8H)
        b_cat = _regroup_bias(b_ih[0] + b_hh[0], b_ih[1] + b_hh[1])              # (1,8H)
        return pl.pallas_call(
            bilstm_max_fused_kernel,
            out_shape=out_shape,
            in_specs=[vmem] * 6,
            out_specs=vmem,
            scratch_shapes=scratch,
        )(x2, wih_cat, whh_cat, b_cat, h0_cat, c0_cat)

    # v5e path: per-direction recurrent weights, block-diagonal input weight.
    wih_f = _reorder_ifog(jnp.transpose(w_ih[0]))              # (D, 4H)
    wih_b = _reorder_ifog(jnp.transpose(w_ih[1]))              # (D, 4H)
    z = jnp.zeros_like(wih_f)
    wih_blk = jnp.concatenate(
        [jnp.concatenate([wih_f, z], axis=-1),
         jnp.concatenate([z, wih_b], axis=-1)], axis=0)        # (2D, 8H)
    whh_f = _reorder_ifog(jnp.transpose(w_hh[0]))              # (H, 4H)
    whh_b = _reorder_ifog(jnp.transpose(w_hh[1]))              # (H, 4H)
    b_split = jnp.concatenate([_reorder_ifog(b_ih[0] + b_hh[0]),
                               _reorder_ifog(b_ih[1] + b_hh[1])])[None, :]  # (1,8H)
    return pl.pallas_call(
        bilstm_max_split_kernel,
        out_shape=out_shape,
        in_specs=[vmem] * 7,
        out_specs=vmem,
        scratch_shapes=scratch,
    )(x2, wih_blk, whh_f, whh_b, b_split, h0_cat, c0_cat)


# --------------------------------------------------------------------------
# Pure-JAX reference on the ORIGINAL (PyTorch-layout) parameters.
# --------------------------------------------------------------------------
def ref_bilstm_max(data, w_ih, w_hh, b_ih, b_hh, h0, c0):
    S = data.shape[0]
    H = h0.shape[-1]
    outs = []
    for d, rev in ((0, False), (1, True)):
        order = range(S - 1, -1, -1) if rev else range(S)
        h, c = h0[d], c0[d]
        hs = []
        for t in order:
            g = data[t:t + 1] @ w_ih[d].T + b_ih[d] + h @ w_hh[d].T + b_hh[d]
            i = jax.nn.sigmoid(g[:, 0 * H:1 * H])
            f = jax.nn.sigmoid(g[:, 1 * H:2 * H])
            gg = jnp.tanh(g[:, 2 * H:3 * H])
            o = jax.nn.sigmoid(g[:, 3 * H:4 * H])
            c = f * c + i * gg
            h = o * jnp.tanh(c)
            hs.append(h)
        outs.append(jnp.max(jnp.stack(hs, 0), axis=0))
    return jnp.concatenate(outs, axis=-1)


if __name__ == "__main__":
    INPUT_DIM = 16
    HIDDEN_DIM = 32

    key = jax.random.PRNGKey(0)
    keys = jax.random.split(key, 12)

    # PyTorch default LSTM init: U(-k, k), k = 1/sqrt(H).
    k_init = 1.0 / np.sqrt(HIDDEN_DIM)

    def uinit(k, shape):
        return jax.random.uniform(k, shape, jnp.float32, minval=-k_init, maxval=k_init)

    # Index 0 = forward, 1 = reverse (matches nn.LSTM _l0 / _l0_reverse).
    w_ih = jnp.stack([uinit(keys[0], (4 * HIDDEN_DIM, INPUT_DIM)),
                      uinit(keys[1], (4 * HIDDEN_DIM, INPUT_DIM))])
    w_hh = jnp.stack([uinit(keys[2], (4 * HIDDEN_DIM, HIDDEN_DIM)),
                      uinit(keys[3], (4 * HIDDEN_DIM, HIDDEN_DIM))])
    b_ih = jnp.stack([uinit(keys[4], (4 * HIDDEN_DIM,)),
                      uinit(keys[5], (4 * HIDDEN_DIM,))])
    b_hh = jnp.stack([uinit(keys[6], (4 * HIDDEN_DIM,)),
                      uinit(keys[7], (4 * HIDDEN_DIM,))])

    # initHidden_Cell: torch.randn([2, 1, hidden]) -> deterministic normal here.
    h0 = jax.random.normal(keys[8], (2, 1, HIDDEN_DIM), jnp.float32)
    c0 = jax.random.normal(keys[9], (2, 1, HIDDEN_DIM), jnp.float32)

    # Exercise: merged unrolled path, split (v5e-style) unrolled path,
    # and the merged fori_loop(unroll=8) path for S > 32.
    cases = ((8, False), (8, True), (40, False))
    for seq_len, split in cases:
        data = jax.random.normal(jax.random.fold_in(keys[10], seq_len),
                                 (seq_len, INPUT_DIM), jnp.float32)
        out = step_model_forward(data, w_ih, w_hh, b_ih, b_hh, h0, c0,
                                 split_directions=split)
        out = jax.block_until_ready(out)
        ref = ref_bilstm_max(data, w_ih, w_hh, b_ih, b_hh, h0, c0)
        np.testing.assert_allclose(np.asarray(out), np.asarray(ref),
                                   rtol=1e-5, atol=1e-5)
        assert out.shape == (1, 2 * HIDDEN_DIM)

    print("KERNEL_OK")
</pallas_src>

<mosaic_0001>
module attributes {stable_mosaic.version = 11 : i64} {
  func.func @bilstm_max_fused_kernel(%arg0: memref<8x32xf32, #tpu.memory_space<vmem>>, %arg1: memref<32x256xf32, #tpu.memory_space<vmem>>, %arg2: memref<64x256xf32, #tpu.memory_space<vmem>>, %arg3: memref<1x256xf32, #tpu.memory_space<vmem>>, %arg4: memref<1x64xf32, #tpu.memory_space<vmem>>, %arg5: memref<1x64xf32, #tpu.memory_space<vmem>>, %arg6: memref<1x64xf32, #tpu.memory_space<vmem>>) attributes {dimension_semantics = [], scalar_prefetch = 0 : i64, scratch_operands = 0 : i64, tpu.core_type = #tpu.core_type<tc>} {
    %c0 = arith.constant 0 : index
    %c0_0 = arith.constant 0 : index
    %0 = vector.load %arg2[%c0, %c0_0] : memref<64x256xf32, #tpu.memory_space<vmem>>, vector<64x256xf32>
    %c0_1 = arith.constant 0 : index
    %c0_2 = arith.constant 0 : index
    %1 = vector.load %arg4[%c0_1, %c0_2] : memref<1x64xf32, #tpu.memory_space<vmem>>, vector<1x64xf32>
    %c0_3 = arith.constant 0 : index
    %c0_4 = arith.constant 0 : index
    %2 = vector.load %arg5[%c0_3, %c0_4] : memref<1x64xf32, #tpu.memory_space<vmem>>, vector<1x64xf32>
    %cst = arith.constant 0xFF800000 : f32
    %3 = vector.broadcast %cst : f32 to vector<1x64xf32>
    %c0_5 = arith.constant 0 : index
    %c0_6 = arith.constant 0 : index
    %4 = vector.load %arg0[%c0_5, %c0_6] : memref<8x32xf32, #tpu.memory_space<vmem>>, vector<8x32xf32>
    %c0_7 = arith.constant 0 : index
    %c0_8 = arith.constant 0 : index
    %5 = vector.load %arg1[%c0_7, %c0_8] : memref<32x256xf32, #tpu.memory_space<vmem>>, vector<32x256xf32>
    %cst_9 = arith.constant dense<0.000000e+00> : vector<8x256xf32>
    %6 = tpu.matmul %4, %5, %cst_9 {dimension_numbers = #tpu.dot_dimension_numbers<[1], [0], [0], [1], [0, 0, 1, 1], [], []>} : vector<8x32xf32>, vector<32x256xf32>, vector<8x256xf32> -> vector<8x256xf32>
    %c0_10 = arith.constant 0 : index
    %c0_11 = arith.constant 0 : index
    %7 = vector.load %arg3[%c0_10, %c0_11] : memref<1x256xf32, #tpu.memory_space<vmem>>, vector<1x256xf32>
    %8 = vector.broadcast %7 : vector<1x256xf32> to vector<8x256xf32>
    %9 = arith.addf %6, %8 : vector<8x256xf32>
    %10 = vector.extract_strided_slice %9 {offsets = [0, 0], sizes = [1, 256], strides = [1, 1]} : vector<8x256xf32> to vector<1x256xf32>
    %cst_12 = arith.constant dense<0.000000e+00> : vector<1x256xf32>
    %11 = tpu.matmul %1, %0, %cst_12 {dimension_numbers = #tpu.dot_dimension_numbers<[1], [0], [0], [1], [0, 0, 1, 1], [], []>} : vector<1x64xf32>, vector<64x256xf32>, vector<1x256xf32> -> vector<1x256xf32>
    %12 = arith.addf %10, %11 : vector<1x256xf32>
    %13 = vector.extract_strided_slice %12 {offsets = [0, 0], sizes = [1, 192], strides = [1, 1]} : vector<1x256xf32> to vector<1x192xf32>
    %cst_13 = arith.constant 0.000000e+00 : f32
    %14 = vector.broadcast %cst_13 : f32 to vector<1x192xf32>
    %15 = arith.subf %14, %13 : vector<1x192xf32>
    %16 = math.exp %15 : vector<1x192xf32>
    %cst_14 = arith.constant 1.000000e+00 : f32
    %17 = vector.broadcast %cst_14 : f32 to vector<1x192xf32>
    %18 = arith.addf %17, %16 : vector<1x192xf32>
    %19 = tpu.reciprocal %18 : vector<1x192xf32> -> vector<1x192xf32>
    %20 = vector.extract_strided_slice %12 {offsets = [0, 192], sizes = [1, 64], strides = [1, 1]} : vector<1x256xf32> to vector<1x64xf32>
    %21 = math.tanh %20 : vector<1x64xf32>
    %22 = vector.extract_strided_slice %19 {offsets = [0, 0], sizes = [1, 64], strides = [1, 1]} : vector<1x192xf32> to vector<1x64xf32>
    %23 = vector.extract_strided_slice %19 {offsets = [0, 64], sizes = [1, 64], strides = [1, 1]} : vector<1x192xf32> to vector<1x64xf32>
    %24 = vector.extract_strided_slice %19 {offsets = [0, 128], sizes = [1, 64], strides = [1, 1]} : vector<1x192xf32> to vector<1x64xf32>
    %25 = arith.mulf %23, %2 : vector<1x64xf32>
    %26 = arith.mulf %22, %21 : vector<1x64xf32>
    %27 = arith.addf %25, %26 : vector<1x64xf32>
    %28 = math.tanh %27 : vector<1x64xf32>
    %29 = arith.mulf %24, %28 : vector<1x64xf32>
    %30 = arith.maximumf %3, %29 : vector<1x64xf32>
    %31 = vector.extract_strided_slice %9 {offsets = [1, 0], sizes = [1, 256], strides = [1, 1]} : vector<8x256xf32> to vector<1x256xf32>
    %cst_15 = arith.constant dense<0.000000e+00> : vector<1x256xf32>
    %32 = tpu.matmul %29, %0, %cst_15 {dimension_numbers = #tpu.dot_dimension_numbers<[1], [0], [0], [1], [0, 0, 1, 1], [], []>} : vector<1x64xf32>, vector<64x256xf32>, vector<1x256xf32> -> vector<1x256xf32>
    %33 = arith.addf %31, %32 : vector<1x256xf32>
    %34 = vector.extract_strided_slice %33 {offsets = [0, 0], sizes = [1, 192], strides = [1, 1]} : vector<1x256xf32> to vector<1x192xf32>
    %cst_16 = arith.constant 0.000000e+00 : f32
    %35 = vector.broadcast %cst_16 : f32 to vector<1x192xf32>
    %36 = arith.subf %35, %34 : vector<1x192xf32>
    %37 = math.exp %36 : vector<1x192xf32>
    %cst_17 = arith.constant 1.000000e+00 : f32
    %38 = vector.broadcast %cst_17 : f32 to vector<1x192xf32>
    %39 = arith.addf %38, %37 : vector<1x192xf32>
    %40 = tpu.reciprocal %39 : vector<1x192xf32> -> vector<1x192xf32>
    %41 = vector.extract_strided_slice %33 {offsets = [0, 192], sizes = [1, 64], strides = [1, 1]} : vector<1x256xf32> to vector<1x64xf32>
    %42 = math.tanh %41 : vector<1x64xf32>
    %43 = vector.extract_strided_slice %40 {offsets = [0, 0], sizes = [1, 64], strides = [1, 1]} : vector<1x192xf32> to vector<1x64xf32>
    %44 = vector.extract_strided_slice %40 {offsets = [0, 64], sizes = [1, 64], strides = [1, 1]} : vector<1x192xf32> to vector<1x64xf32>
    %45 = vector.extract_strided_slice %40 {offsets = [0, 128], sizes = [1, 64], strides = [1, 1]} : vector<1x192xf32> to vector<1x64xf32>
    %46 = arith.mulf %44, %27 : vector<1x64xf32>
    %47 = arith.mulf %43, %42 : vector<1x64xf32>
    %48 = arith.addf %46, %47 : vector<1x64xf32>
    %49 = math.tanh %48 : vector<1x64xf32>
    %50 = arith.mulf %45, %49 : vector<1x64xf32>
    %51 = arith.maximumf %30, %50 : vector<1x64xf32>
    %52 = vector.extract_strided_slice %9 {offsets = [2, 0], sizes = [1, 256], strides = [1, 1]} : vector<8x256xf32> to vector<1x256xf32>
    %cst_18 = arith.constant dense<0.000000e+00> : vector<1x256xf32>
    %53 = tpu.matmul %50, %0, %cst_18 {dimension_numbers = #tpu.dot_dimension_numbers<[1], [0], [0], [1], [0, 0, 1, 1], [], []>} : vector<1x64xf32>, vector<64x256xf32>, vector<1x256xf32> -> vector<1x256xf32>
    %54 = arith.addf %52, %53 : vector<1x256xf32>
    %55 = vector.extract_strided_slice %54 {offsets = [0, 0], sizes = [1, 192], strides = [1, 1]} : vector<1x256xf32> to vector<1x192xf32>
    %cst_19 = arith.constant 0.000000e+00 : f32
    %56 = vector.broadcast %cst_19 : f32 to vector<1x192xf32>
    %57 = arith.subf %56, %55 : vector<1x192xf32>
    %58 = math.exp %57 : vector<1x192xf32>
    %cst_20 = arith.constant 1.000000e+00 : f32
    %59 = vector.broadcast %cst_20 : f32 to vector<1x192xf32>
    %60 = arith.addf %59, %58 : vector<1x192xf32>
    %61 = tpu.reciprocal %60 : vector<1x192xf32> -> vector<1x192xf32>
    %62 = vector.extract_strided_slice %54 {offsets = [0, 192], sizes = [1, 64], strides = [1, 1]} : vector<1x256xf32> to vector<1x64xf32>
    %63 = math.tanh %62 : vector<1x64xf32>
    %64 = vector.extract_strided_slice %61 {offsets = [0, 0], sizes = [1, 64], strides = [1, 1]} : vector<1x192xf32> to vector<1x64xf32>
    %65 = vector.extract_strided_slice %61 {offsets = [0, 64], sizes = [1, 64], strides = [1, 1]} : vector<1x192xf32> to vector<1x64xf32>
    %66 = vector.extract_strided_slice %61 {offsets = [0, 128], sizes = [1, 64], strides = [1, 1]} : vector<1x192xf32> to vector<1x64xf32>
    %67 = arith.mulf %65, %48 : vector<1x64xf32>
    %68 = arith.mulf %64, %63 : vector<1x64xf32>
    %69 = arith.addf %67, %68 : vector<1x64xf32>
    %70 = math.tanh %69 : vector<1x64xf32>
    %71 = arith.mulf %66, %70 : vector<1x64xf32>
    %72 = arith.maximumf %51, %71 : vector<1x64xf32>
    %73 = vector.extract_strided_slice %9 {offsets = [3, 0], sizes = [1, 256], strides = [1, 1]} : vector<8x256xf32> to vector<1x256xf32>
    %cst_21 = arith.constant dense<0.000000e+00> : vector<1x256xf32>
    %74 = tpu.matmul %71, %0, %cst_21 {dimension_numbers = #tpu.dot_dimension_numbers<[1], [0], [0], [1], [0, 0, 1, 1], [], []>} : vector<1x64xf32>, vector<64x256xf32>, vector<1x256xf32> -> vector<1x256xf32>
    %75 = arith.addf %73, %74 : vector<1x256xf32>
    %76 = vector.extract_strided_slice %75 {offsets = [0, 0], sizes = [1, 192], strides = [1, 1]} : vector<1x256xf32> to vector<1x192xf32>
    %cst_22 = arith.constant 0.000000e+00 : f32
    %77 = vector.broadcast %cst_22 : f32 to vector<1x192xf32>
    %78 = arith.subf %77, %76 : vector<1x192xf32>
    %79 = math.exp %78 : vector<1x192xf32>
    %cst_23 = arith.constant 1.000000e+00 : f32
    %80 = vector.broadcast %cst_23 : f32 to vector<1x192xf32>
    %81 = arith.addf %80, %79 : vector<1x192xf32>
    %82 = tpu.reciprocal %81 : vector<1x192xf32> -> vector<1x192xf32>
    %83 = vector.extract_strided_slice %75 {offsets = [0, 192], sizes = [1, 64], strides = [1, 1]} : vector<1x256xf32> to vector<1x64xf32>
    %84 = math.tanh %83 : vector<1x64xf32>
    %85 = vector.extract_strided_slice %82 {offsets = [0, 0], sizes = [1, 64], strides = [1, 1]} : vector<1x192xf32> to vector<1x64xf32>
    %86 = vector.extract_strided_slice %82 {offsets = [0, 64], sizes = [1, 64], strides = [1, 1]} : vector<1x192xf32> to vector<1x64xf32>
    %87 = vector.extract_strided_slice %82 {offsets = [0, 128], sizes = [1, 64], strides = [1, 1]} : vector<1x192xf32> to vector<1x64xf32>
    %88 = arith.mulf %86, %69 : vector<1x64xf32>
    %89 = arith.mulf %85, %84 : vector<1x64xf32>
    %90 = arith.addf %88, %89 : vector<1x64xf32>
    %91 = math.tanh %90 : vector<1x64xf32>
    %92 = arith.mulf %87, %91 : vector<1x64xf32>
    %93 = arith.maximumf %72, %92 : vector<1x64xf32>
    %94 = vector.extract_strided_slice %9 {offsets = [4, 0], sizes = [1, 256], strides = [1, 1]} : vector<8x256xf32> to vector<1x256xf32>
    %cst_24 = arith.constant dense<0.000000e+00> : vector<1x256xf32>
    %95 = tpu.matmul %92, %0, %cst_24 {dimension_numbers = #tpu.dot_dimension_numbers<[1], [0], [0], [1], [0, 0, 1, 1], [], []>} : vector<1x64xf32>, vector<64x256xf32>, vector<1x256xf32> -> vector<1x256xf32>
    %96 = arith.addf %94, %95 : vector<1x256xf32>
    %97 = vector.extract_strided_slice %96 {offsets = [0, 0], sizes = [1, 192], strides = [1, 1]} : vector<1x256xf32> to vector<1x192xf32>
    %cst_25 = arith.constant 0.000000e+00 : f32
    %98 = vector.broadcast %cst_25 : f32 to vector<1x192xf32>
    %99 = arith.subf %98, %97 : vector<1x192xf32>
    %100 = math.exp %99 : vector<1x192xf32>
    %cst_26 = arith.constant 1.000000e+00 : f32
    %101 = vector.broadcast %cst_26 : f32 to vector<1x192xf32>
    %102 = arith.addf %101, %100 : vector<1x192xf32>
    %103 = tpu.reciprocal %102 : vector<1x192xf32> -> vector<1x192xf32>
    %104 = vector.extract_strided_slice %96 {offsets = [0, 192], sizes = [1, 64], strides = [1, 1]} : vector<1x256xf32> to vector<1x64xf32>
    %105 = math.tanh %104 : vector<1x64xf32>
    %106 = vector.extract_strided_slice %103 {offsets = [0, 0], sizes = [1, 64], strides = [1, 1]} : vector<1x192xf32> to vector<1x64xf32>
    %107 = vector.extract_strided_slice %103 {offsets = [0, 64], sizes = [1, 64], strides = [1, 1]} : vector<1x192xf32> to vector<1x64xf32>
    %108 = vector.extract_strided_slice %103 {offsets = [0, 128], sizes = [1, 64], strides = [1, 1]} : vector<1x192xf32> to vector<1x64xf32>
    %109 = arith.mulf %107, %90 : vector<1x64xf32>
    %110 = arith.mulf %106, %105 : vector<1x64xf32>
    %111 = arith.addf %109, %110 : vector<1x64xf32>
    %112 = math.tanh %111 : vector<1x64xf32>
    %113 = arith.mulf %108, %112 : vector<1x64xf32>
    %114 = arith.maximumf %93, %113 : vector<1x64xf32>
    %115 = vector.extract_strided_slice %9 {offsets = [5, 0], sizes = [1, 256], strides = [1, 1]} : vector<8x256xf32> to vector<1x256xf32>
    %cst_27 = arith.constant dense<0.000000e+00> : vector<1x256xf32>
    %116 = tpu.matmul %113, %0, %cst_27 {dimension_numbers = #tpu.dot_dimension_numbers<[1], [0], [0], [1], [0, 0, 1, 1], [], []>} : vector<1x64xf32>, vector<64x256xf32>, vector<1x256xf32> -> vector<1x256xf32>
    %117 = arith.addf %115, %116 : vector<1x256xf32>
    %118 = vector.extract_strided_slice %117 {offsets = [0, 0], sizes = [1, 192], strides = [1, 1]} : vector<1x256xf32> to vector<1x192xf32>
    %cst_28 = arith.constant 0.000000e+00 : f32
    %119 = vector.broadcast %cst_28 : f32 to vector<1x192xf32>
    %120 = arith.subf %119, %118 : vector<1x192xf32>
    %121 = math.exp %120 : vector<1x192xf32>
    %cst_29 = arith.constant 1.000000e+00 : f32
    %122 = vector.broadcast %cst_29 : f32 to vector<1x192xf32>
    %123 = arith.addf %122, %121 : vector<1x192xf32>
    %124 = tpu.reciprocal %123 : vector<1x192xf32> -> vector<1x192xf32>
    %125 = vector.extract_strided_slice %117 {offsets = [0, 192], sizes = [1, 64], strides = [1, 1]} : vector<1x256xf32> to vector<1x64xf32>
    %126 = math.tanh %125 : vector<1x64xf32>
    %127 = vector.extract_strided_slice %124 {offsets = [0, 0], sizes = [1, 64], strides = [1, 1]} : vector<1x192xf32> to vector<1x64xf32>
    %128 = vector.extract_strided_slice %124 {offsets = [0, 64], sizes = [1, 64], strides = [1, 1]} : vector<1x192xf32> to vector<1x64xf32>
    %129 = vector.extract_strided_slice %124 {offsets = [0, 128], sizes = [1, 64], strides = [1, 1]} : vector<1x192xf32> to vector<1x64xf32>
    %130 = arith.mulf %128, %111 : vector<1x64xf32>
    %131 = arith.mulf %127, %126 : vector<1x64xf32>
    %132 = arith.addf %130, %131 : vector<1x64xf32>
    %133 = math.tanh %132 : vector<1x64xf32>
    %134 = arith.mulf %129, %133 : vector<1x64xf32>
    %135 = arith.maximumf %114, %134 : vector<1x64xf32>
    %136 = vector.extract_strided_slice %9 {offsets = [6, 0], sizes = [1, 256], strides = [1, 1]} : vector<8x256xf32> to vector<1x256xf32>
    %cst_30 = arith.constant dense<0.000000e+00> : vector<1x256xf32>
    %137 = tpu.matmul %134, %0, %cst_30 {dimension_numbers = #tpu.dot_dimension_numbers<[1], [0], [0], [1], [0, 0, 1, 1], [], []>} : vector<1x64xf32>, vector<64x256xf32>, vector<1x256xf32> -> vector<1x256xf32>
    %138 = arith.addf %136, %137 : vector<1x256xf32>
    %139 = vector.extract_strided_slice %138 {offsets = [0, 0], sizes = [1, 192], strides = [1, 1]} : vector<1x256xf32> to vector<1x192xf32>
    %cst_31 = arith.constant 0.000000e+00 : f32
    %140 = vector.broadcast %cst_31 : f32 to vector<1x192xf32>
    %141 = arith.subf %140, %139 : vector<1x192xf32>
    %142 = math.exp %141 : vector<1x192xf32>
    %cst_32 = arith.constant 1.000000e+00 : f32
    %143 = vector.broadcast %cst_32 : f32 to vector<1x192xf32>
    %144 = arith.addf %143, %142 : vector<1x192xf32>
    %145 = tpu.reciprocal %144 : vector<1x192xf32> -> vector<1x192xf32>
    %146 = vector.extract_strided_slice %138 {offsets = [0, 192], sizes = [1, 64], strides = [1, 1]} : vector<1x256xf32> to vector<1x64xf32>
    %147 = math.tanh %146 : vector<1x64xf32>
    %148 = vector.extract_strided_slice %145 {offsets = [0, 0], sizes = [1, 64], strides = [1, 1]} : vector<1x192xf32> to vector<1x64xf32>
    %149 = vector.extract_strided_slice %145 {offsets = [0, 64], sizes = [1, 64], strides = [1, 1]} : vector<1x192xf32> to vector<1x64xf32>
    %150 = vector.extract_strided_slice %145 {offsets = [0, 128], sizes = [1, 64], strides = [1, 1]} : vector<1x192xf32> to vector<1x64xf32>
    %151 = arith.mulf %149, %132 : vector<1x64xf32>
    %152 = arith.mulf %148, %147 : vector<1x64xf32>
    %153 = arith.addf %151, %152 : vector<1x64xf32>
    %154 = math.tanh %153 : vector<1x64xf32>
    %155 = arith.mulf %150, %154 : vector<1x64xf32>
    %156 = arith.maximumf %135, %155 : vector<1x64xf32>
    %157 = vector.extract_strided_slice %9 {offsets = [7, 0], sizes = [1, 256], strides = [1, 1]} : vector<8x256xf32> to vector<1x256xf32>
    %cst_33 = arith.constant dense<0.000000e+00> : vector<1x256xf32>
    %158 = tpu.matmul %155, %0, %cst_33 {dimension_numbers = #tpu.dot_dimension_numbers<[1], [0], [0], [1], [0, 0, 1, 1], [], []>} : vector<1x64xf32>, vector<64x256xf32>, vector<1x256xf32> -> vector<1x256xf32>
    %159 = arith.addf %157, %158 : vector<1x256xf32>
    %160 = vector.extract_strided_slice %159 {offsets = [0, 0], sizes = [1, 192], strides = [1, 1]} : vector<1x256xf32> to vector<1x192xf32>
    %cst_34 = arith.constant 0.000000e+00 : f32
    %161 = vector.broadcast %cst_34 : f32 to vector<1x192xf32>
    %162 = arith.subf %161, %160 : vector<1x192xf32>
    %163 = math.exp %162 : vector<1x192xf32>
    %cst_35 = arith.constant 1.000000e+00 : f32
    %164 = vector.broadcast %cst_35 : f32 to vector<1x192xf32>
    %165 = arith.addf %164, %163 : vector<1x192xf32>
    %166 = tpu.reciprocal %165 : vector<1x192xf32> -> vector<1x192xf32>
    %167 = vector.extract_strided_slice %159 {offsets = [0, 192], sizes = [1, 64], strides = [1, 1]} : vector<1x256xf32> to vector<1x64xf32>
    %168 = math.tanh %167 : vector<1x64xf32>
    %169 = vector.extract_strided_slice %166 {offsets = [0, 0], sizes = [1, 64], strides = [1, 1]} : vector<1x192xf32> to vector<1x64xf32>
    %170 = vector.extract_strided_slice %166 {offsets = [0, 64], sizes = [1, 64], strides = [1, 1]} : vector<1x192xf32> to vector<1x64xf32>
    %171 = vector.extract_strided_slice %166 {offsets = [0, 128], sizes = [1, 64], strides = [1, 1]} : vector<1x192xf32> to vector<1x64xf32>
    %172 = arith.mulf %170, %153 : vector<1x64xf32>
    %173 = arith.mulf %169, %168 : vector<1x64xf32>
    %174 = arith.addf %172, %173 : vector<1x64xf32>
    %175 = math.tanh %174 : vector<1x64xf32>
    %176 = arith.mulf %171, %175 : vector<1x64xf32>
    %177 = arith.maximumf %156, %176 : vector<1x64xf32>
    %c0_36 = arith.constant 0 : index
    %c0_37 = arith.constant 0 : index
    %178 = vector.load %arg6[%c0_36, %c0_37] : memref<1x64xf32, #tpu.memory_space<vmem>>, vector<1x64xf32>
    tpu.vector_store %arg6[%c0_36, %c0_37], %177 {strides = array<i32>} : memref<1x64xf32, #tpu.memory_space<vmem>>, vector<1x64xf32>,
    return
  }
}

</mosaic_0001>

<llo_original>
// kernel: tpu_custom_call.1
$region0: #{tpu_custom_call.1}
  #allocation0 [shape = 'u32[]', space=smem, size = 0x4, offset = 0x4, fixed_abs, tag = 'smem constant byte address 0x4 - core index']
  #allocation1 [shape = 'u32[144,128]{1,0:T(1,128)}', space=vmem, size = 0x12000, scoped, tag = 'internal scratch']
  %s0 = inlined_call_operand.hbm [shape: f32[8,32], index: 0, kind: input, shape index: {}]
  %s1 = inlined_call_operand.hbm [shape: f32[32,256], index: 1, kind: input, shape index: {}]
  %s2 = inlined_call_operand.hbm [shape: f32[64,256], index: 2, kind: input, shape index: {}]
  %s3 = inlined_call_operand.vmem [shape: f32[1,256], index: 3, kind: input, shape index: {}]
  %s4 = inlined_call_operand.vmem [shape: f32[1,64], index: 4, kind: input, shape index: {}]
  %s5 = inlined_call_operand.vmem [shape: f32[1,64], index: 5, kind: input, shape index: {}]
  %s6 = inlined_call_operand.hbm [shape: f32[1,64], index: 6, kind: output, shape index: {}]
  %s7 = sld [smem:[#allocation0]]
  $region46: #{tpu_custom_call.1} parent=0
    _
  %s9 = ssub.s32 1, %s7
  %s10 = scalar_select 0, %s9, %s7
  $region1: #{tpu_custom_call.1} parent=0
    #allocation2 [shape = 'u8[4096]{0}', space=vmem, size = 0x1000, scoped, tag = 'input window, operand 0, single buffered']
    #allocation3 [shape = 's32[1]{0}', space=sflag, size = 0x4, scoped, tag = 'scoped memory for tpu_custom_call.1']
    #allocation4 [shape = 's32[1]{0}', space=sflag, size = 0x4, scoped, tag = 'scoped memory for tpu_custom_call.1']
    #allocation5 [shape = 'u8[32768]{0}', space=vmem, size = 0x8000, scoped, tag = 'input window, operand 1, single buffered']
    #allocation6 [shape = 's32[1]{0}', space=sflag, size = 0x4, scoped, tag = 'scoped memory for tpu_custom_call.1']
    #allocation7 [shape = 'u8[65536]{0}', space=vmem, size = 0x10000, scoped, tag = 'input window, operand 2, single buffered']
    #allocation8 [shape = 'u8[512]{0}', space=vmem, size = 0x400, scoped, tag = 'output window, operand 0, single buffered']
    %11 = vsyncpa [#allocation3], 0
    %12 = vsyncpa [#allocation6], 0
    %13 = vsyncpa [#allocation4], 0
    // Predicated region
    $region2: #{tpu_custom_call.1} parent=1 // pred_check
      _
    $region3: #{tpu_custom_call.1} parent=1 // pred_check_branch
      %15 = sbr.rel (0) target = $region5
    $region4: #{tpu_custom_call.1} parent=1 // pred_region
      %s17 = ssub.s32 128, 128
      %18 = vsyncadd [#allocation3], %s17
      %s20 = sshll.u32 [#allocation2], 4
      %s21 = int_to_ptr.vmem [resolvable:$true] %s20
      %23 = dma.hbm_to_vmem [thread:$0]  %s0, 128, %s21, [#allocation3]
    $region5: #{tpu_custom_call.1} parent=1 // pred_fallthru
      _
    // Predicated region
    $region6: #{tpu_custom_call.1} parent=1 // pred_check
      _
    $region7: #{tpu_custom_call.1} parent=1 // pred_check_branch
      %25 = sbr.rel (0) target = $region9
    $region8: #{tpu_custom_call.1} parent=1 // pred_region
      %s27 = ssub.s32 1024, 1024
      %28 = vsyncadd [#allocation6], %s27
      %s29 = sshll.u32 [#allocation5], 4
      %s30 = int_to_ptr.vmem [resolvable:$true] %s29
      %35 = dma.hbm_to_vmem [thread:$0]  %s1, 1024, %s30, [#allocation6], 256, 256, 16
    $region9: #{tpu_custom_call.1} parent=1 // pred_fallthru
      _
    // Predicated region
    $region10: #{tpu_custom_call.1} parent=1 // pred_check
      _
    $region11: #{tpu_custom_call.1} parent=1 // pred_check_branch
      %37 = sbr.rel (0) target = $region13
    $region12: #{tpu_custom_call.1} parent=1 // pred_region
      %s39 = ssub.s32 2048, 2048
      %40 = vsyncadd [#allocation6], %s39
      %s41 = sshll.u32 [#allocation7], 4
      %s42 = int_to_ptr.vmem [resolvable:$true] %s41
      %47 = dma.hbm_to_vmem [thread:$0]  %s2, 2048, %s42, [#allocation6], 256, 256, 16
    $region13: #{tpu_custom_call.1} parent=1 // pred_fallthru
      _
    // Predicated region
    $region14: #{tpu_custom_call.1} parent=1 // pred_check
      _
    $region15: #{tpu_custom_call.1} parent=1 // pred_check_branch
      %49 = sbr.rel (0) target = $region17
    $region16: #{tpu_custom_call.1} parent=1 // pred_region
      _
    $region17: #{tpu_custom_call.1} parent=1 // pred_fallthru
      _
    // Predicated region
    $region18: #{tpu_custom_call.1} parent=1 // pred_check
      _
    $region19: #{tpu_custom_call.1} parent=1 // pred_check_branch
      %51 = sbr.rel (0) target = $region21
    $region20: #{tpu_custom_call.1} parent=1 // pred_region
      _
    $region21: #{tpu_custom_call.1} parent=1 // pred_fallthru
      _
    // Predicated region
    $region22: #{tpu_custom_call.1} parent=1 // pred_check
      _
    $region23: #{tpu_custom_call.1} parent=1 // pred_check_branch
      %53 = sbr.rel (0) target = $region25
    $region24: #{tpu_custom_call.1} parent=1 // pred_region
      _
    $region25: #{tpu_custom_call.1} parent=1 // pred_fallthru
      _
    // Predicated region
    $region26: #{tpu_custom_call.1} parent=1 // pred_check
      _
    $region27: #{tpu_custom_call.1} parent=1 // pred_check_branch
      %55 = sbr.rel (0) target = $region29
    $region28: #{tpu_custom_call.1} parent=1 // pred_region
      %56 = dma.done [#allocation3], 128
    $region29: #{tpu_custom_call.1} parent=1 // pred_fallthru
      _
    // Predicated region
    $region30: #{tpu_custom_call.1} parent=1 // pred_check
      _
    $region31: #{tpu_custom_call.1} parent=1 // pred_check_branch
      %58 = sbr.rel (0) target = $region33
    $region32: #{tpu_custom_call.1} parent=1 // pred_region
      %59 = dma.done [#allocation6], 1024
    $region33: #{tpu_custom_call.1} parent=1 // pred_fallthru
      _
    // Predicated region
    $region34: #{tpu_custom_call.1} parent=1 // pred_check
      _
    $region35: #{tpu_custom_call.1} parent=1 // pred_check_branch
      %61 = sbr.rel (0) target = $region37
    $region36: #{tpu_custom_call.1} parent=1 // pred_region
      %62 = dma.done [#allocation6], 2048
    $region37: #{tpu_custom_call.1} parent=1 // pred_fallthru
      _
    %v63 = vld [vmem:[#allocation7] sm:$0xff]
    %v64 = vld [vmem:[#allocation7 + $0x8] sm:$0xff]
    %v65 = vld [vmem:[#allocation7 + $0x10] sm:$0xff]
    %v66 = vld [vmem:[#allocation7 + $0x18] sm:$0xff]
    %v67 = vld [vmem:[#allocation7 + $0x20] sm:$0xff]
    %v68 = vld [vmem:[#allocation7 + $0x28] sm:$0xff]
    %v69 = vld [vmem:[#allocation7 + $0x30] sm:$0xff]
    %v70 = vld [vmem:[#allocation7 + $0x38] sm:$0xff]
    %v71 = vld [vmem:[#allocation7 + $0x40] sm:$0xff]
    %v72 = vld [vmem:[#allocation7 + $0x48] sm:$0xff]
    %v73 = vld [vmem:[#allocation7 + $0x50] sm:$0xff]
    %v74 = vld [vmem:[#allocation7 + $0x58] sm:$0xff]
    %v75 = vld [vmem:[#allocation7 + $0x60] sm:$0xff]
    %v76 = vld [vmem:[#allocation7 + $0x68] sm:$0xff]
    %v77 = vld [vmem:[#allocation7 + $0x70] sm:$0xff]
    %v78 = vld [vmem:[#allocation7 + $0x78] sm:$0xff]
    %v79 = vld [vmem:[%s4] sm:$0x1]
    %v80 = vld [vmem:[%s5] sm:$0x1]
    %v81 = vld [vmem:[#allocation2] sm:$0xff]
    %v82 = vld [vmem:[#allocation5] sm:$0xff]
    %v83 = vld [vmem:[#allocation5 + $0x8] sm:$0xff]
    %v84 = vld [vmem:[#allocation5 + $0x10] sm:$0xff]
    %v85 = vld [vmem:[#allocation5 + $0x18] sm:$0xff]
    %v86 = vld [vmem:[#allocation5 + $0x20] sm:$0xff]
    %v87 = vld [vmem:[#allocation5 + $0x28] sm:$0xff]
    %v88 = vld [vmem:[#allocation5 + $0x30] sm:$0xff]
    %v89 = vld [vmem:[#allocation5 + $0x38] sm:$0xff]
    %v90 = vld [vmem:[%s3] sm:$0x3]
    %v92 = vlaneseq
    %v93 = vshrl.u32 %v92, 7
    %v94 = vsub.s32 0, %v93
    %v95 = vrot.slane %v90, %v94
    %v96 = vlaneseq
    %v97 = vshrl.u32 %v96, 7
    %v98 = vsub.s32 1, %v97
    %v99 = vrot.slane %v90, %v98
    %vm102 = vcmask 261120
    %v104 = vsel %vm102, %v81, 0
    %106 = vmatprep.subr.mxu0 %v83
    %107 = vmatpush1.msra.mxu0 %v82
    %108 = vmatprep.subr.mxu0 %v85
    %109 = vmatpush1.msra.mxu0 %v84
    %110 = vmatprep.subr.mxu0 %v87
    %111 = vmatpush1.msra.mxu0 %v86
    %112 = vmatprep.subr.mxu0 %v89
    %113 = vmatpush1.msra.mxu0 %v88
    %114 = vmatprep.subr.mxu0 0.0
    %115 = vmatpush1.msra.mxu0 0.0
    %116 = vmatprep.subr.mxu0 0.0
    %117 = vmatpush1.msra.mxu0 0.0
    %118 = vmatprep.subr.mxu0 0.0
    %119 = vmatpush1.msra.mxu0 0.0
    %120 = vmatprep.subr.mxu0 0.0
    %121 = vmatpush1.msra.mxu0 0.0
    %122 = vmatprep.subr.mxu0 0.0
    %123 = vmatpush1.msra.mxu0 0.0
    %124 = vmatprep.subr.mxu0 0.0
    %125 = vmatpush1.msra.mxu0 0.0
    %126 = vmatprep.subr.mxu0 0.0
    %127 = vmatpush1.msra.mxu0 0.0
    %128 = vmatprep.subr.mxu0 0.0
    %129 = vmatpush1.msra.mxu0 0.0
    %130 = vmatprep.subr.mxu0 0.0
    %131 = vmatpush1.msra.mxu0 0.0
    %132 = vmatprep.subr.mxu0 0.0
    %133 = vmatpush1.msra.mxu0 0.0
    %134 = vmatprep.subr.mxu0 0.0
    %135 = vmatpush1.msra.mxu0 0.0
    %136 = vmatprep.subr.mxu0 0.0
    %137 = vmatpush1.msra.mxu0 0.0
    %138 = vmatprep.subr.mxu0 0.0
    %139 = vmatpush1.msra.mxu0 0.0
    %140 = vmatprep.subr.mxu0 0.0
    %141 = vmatpush1.msra.mxu0 0.0
    %142 = vmatprep.subr.mxu0 0.0
    %143 = vmatpush1.msra.mxu0 0.0
    %144 = vmatprep.subr.mxu0 0.0
    %145 = vmatpush1.msra.mxu0 0.0
    %146 = vmatprep.subr.mxu0 0.0
    %147 = vmatpush1.msra.mxu0 0.0
    %148 = vmatprep.subr.mxu0 0.0
    %149 = vmatpush1.msra.mxu0 0.0
    %150 = vmatprep.subr.mxu0 0.0
    %151 = vmatpush1.msra.mxu0 0.0
    %152 = vmatprep.subr.mxu0 0.0
    %153 = vmatpush1.msra.mxu0 0.0
    %154 = vmatprep.subr.mxu0 0.0
    %155 = vmatpush1.msra.mxu0 0.0
    %156 = vmatprep.subr.mxu0 0.0
    %157 = vmatpush1.msra.mxu0 0.0
    %158 = vmatprep.subr.mxu0 0.0
    %159 = vmatpush1.msra.mxu0 0.0
    %160 = vmatprep.subr.mxu0 0.0
    %161 = vmatpush1.msra.mxu0 0.0
    %162 = vmatprep.subr.mxu0 0.0
    %163 = vmatpush1.msra.mxu0 0.0
    %164 = vmatprep.subr.mxu0 0.0
    %165 = vmatpush1.msra.mxu0 0.0
    %166 = vmatprep.subr.mxu0 0.0
    %167 = vmatpush1.msra.mxu0 0.0
    %168 = vmatprep.subr.mxu0 0.0
    %169 = vmatpush1.msra.mxu0 0.0
    %170 = vmatprep.mubr.f32.mxu0 0.0
    %171 = vmatmul.mubr.f32.gmra.mrb[0].mxu0 %v104
    %v172 = vpop.f32.mrb[0].mxu0
    %v173 = vadd.f32 %v95, %v172
    %v174 = vpop.f32.mrb[0].mxu0
    %v175 = vadd.f32 %v99, %v174
    %176 = vdwg.mxu0
    %vm177 = vcmask 523264
    %v179 = vsel %vm177, %v79, 0
    %181 = vmatprep.subr.mxu0 %v64
    %182 = vmatpush1.msra.mxu0 %v63
    %183 = vmatprep.subr.mxu0 %v66
    %184 = vmatpush1.msra.mxu0 %v65
    %185 = vmatprep.subr.mxu0 %v68
    %186 = vmatpush1.msra.mxu0 %v67
    %187 = vmatprep.subr.mxu0 %v70
    %188 = vmatpush1.msra.mxu0 %v69
    %189 = vmatprep.subr.mxu0 %v72
    %190 = vmatpush1.msra.mxu0 %v71
    %191 = vmatprep.subr.mxu0 %v74
    %192 = vmatpush1.msra.mxu0 %v73
    %193 = vmatprep.subr.mxu0 %v76
    %194 = vmatpush1.msra.mxu0 %v75
    %195 = vmatprep.subr.mxu0 %v78
    %196 = vmatpush1.msra.mxu0 %v77
    %197 = vmatprep.subr.mxu0 0.0
    %198 = vmatpush1.msra.mxu0 0.0
    %199 = vmatprep.subr.mxu0 0.0
    %200 = vmatpush1.msra.mxu0 0.0
    %201 = vmatprep.subr.mxu0 0.0
    %202 = vmatpush1.msra.mxu0 0.0
    %203 = vmatprep.subr.mxu0 0.0
    %204 = vmatpush1.msra.mxu0 0.0
    %205 = vmatprep.subr.mxu0 0.0
    %206 = vmatpush1.msra.mxu0 0.0
    %207 = vmatprep.subr.mxu0 0.0
    %208 = vmatpush1.msra.mxu0 0.0
    %209 = vmatprep.subr.mxu0 0.0
    %210 = vmatpush1.msra.mxu0 0.0
    %211 = vmatprep.subr.mxu0 0.0
    %212 = vmatpush1.msra.mxu0 0.0
    %213 = vmatprep.subr.mxu0 0.0
    %214 = vmatpush1.msra.mxu0 0.0
    %215 = vmatprep.subr.mxu0 0.0
    %216 = vmatpush1.msra.mxu0 0.0
    %217 = vmatprep.subr.mxu0 0.0
    %218 = vmatpush1.msra.mxu0 0.0
    %219 = vmatprep.subr.mxu0 0.0
    %220 = vmatpush1.msra.mxu0 0.0
    %221 = vmatprep.subr.mxu0 0.0
    %222 = vmatpush1.msra.mxu0 0.0
    %223 = vmatprep.subr.mxu0 0.0
    %224 = vmatpush1.msra.mxu0 0.0
    %225 = vmatprep.subr.mxu0 0.0
    %226 = vmatpush1.msra.mxu0 0.0
    %227 = vmatprep.subr.mxu0 0.0
    %228 = vmatpush1.msra.mxu0 0.0
    %229 = vmatprep.subr.mxu0 0.0
    %230 = vmatpush1.msra.mxu0 0.0
    %231 = vmatprep.subr.mxu0 0.0
    %232 = vmatpush1.msra.mxu0 0.0
    %233 = vmatprep.subr.mxu0 0.0
    %234 = vmatpush1.msra.mxu0 0.0
    %235 = vmatprep.subr.mxu0 0.0
    %236 = vmatpush1.msra.mxu0 0.0
    %237 = vmatprep.subr.mxu0 0.0
    %238 = vmatpush1.msra.mxu0 0.0
    %239 = vmatprep.subr.mxu0 0.0
    %240 = vmatpush1.msra.mxu0 0.0
    %241 = vmatprep.subr.mxu0 0.0
    %242 = vmatpush1.msra.mxu0 0.0
    %243 = vmatprep.subr.mxu0 0.0
    %244 = vmatpush1.msra.mxu0 0.0
    %245 = vmatprep.mubr.f32.mxu0 0.0
    %246 = vmatmul.mubr.f32.gmra.mrb[0].mxu0 %v179
    %v247 = vpop.f32.mrb[0].mxu0
    %v248 = vadd.f32 0.0, %v247
    %v249 = vpop.f32.mrb[0].mxu0
    %v250 = vadd.f32 0.0, %v249
    %251 = vdwg.mxu0
    %v252 = vadd.f32 %v173, %v248
    %v253 = vadd.f32 %v175, %v250
    %v254 = vsub.f32 0.0, %v252
    %v255 = vsub.f32 0.0, %v253
    %v256 = vmul.f32 %v254, 1.442695
    %v257 = vpow.pop %v256
    %v258 = vmul.f32 %v255, 1.442695
    %v259 = vpow.pop %v258
    %v260 = vadd.f32 %v257, 1.0
    %v261 = vadd.f32 %v259, 1.0
    %v262 = vrcp.pop %v260
    %v263 = vrcp.pop %v261
    %v264 = vtanh.pop %v253
    %v266 = vlaneseq
    %v267 = vshrl.u32 %v266, 7
    %v268 = vsub.s32 0, %v267
    %v269 = vrot.slane %v80, %v268
    %270 = vrot.lane.b32.xlu0 %v269, 64
    %v271 = vpop.permute.xlu0 %270
    %v273 = vmul.f32 %v262, %v271
    %275 = vrot.lane.b32.xlu0 %v264, 64
    %v276 = vpop.permute.xlu0 %275
    %v278 = vmul.f32 %v262, %v276
    %280 = vrot.lane.b32.xlu0 %v278, 64
    %v281 = vpop.permute.xlu0 %280
    %v283 = vadd.f32 %v273, %v281
    %v284 = vtanh.pop %v283
    %286 = vrot.lane.b32.xlu0 %v284, 64
    %v287 = vpop.permute.xlu0 %286
    %v289 = vmul.f32 %v263, %v287
    %v291 = vsel %vm177, %v289, 0
    %293 = vmatprep.subr.mxu0 %v64
    %294 = vmatpush1.msra.mxu0 %v63
    %295 = vmatprep.subr.mxu0 %v66
    %296 = vmatpush1.msra.mxu0 %v65
    %297 = vmatprep.subr.mxu0 %v68
    %298 = vmatpush1.msra.mxu0 %v67
    %299 = vmatprep.subr.mxu0 %v70
    %300 = vmatpush1.msra.mxu0 %v69
    %301 = vmatprep.subr.mxu0 %v72
    %302 = vmatpush1.msra.mxu0 %v71
    %303 = vmatprep.subr.mxu0 %v74
    %304 = vmatpush1.msra.mxu0 %v73
    %305 = vmatprep.subr.mxu0 %v76
    %306 = vmatpush1.msra.mxu0 %v75
    %307 = vmatprep.subr.mxu0 %v78
    %308 = vmatpush1.msra.mxu0 %v77
    %309 = vmatprep.subr.mxu0 0.0
    %310 = vmatpush1.msra.mxu0 0.0
    %311 = vmatprep.subr.mxu0 0.0
    %312 = vmatpush1.msra.mxu0 0.0
    %313 = vmatprep.subr.mxu0 0.0
    %314 = vmatpush1.msra.mxu0 0.0
    %315 = vmatprep.subr.mxu0 0.0
    %316 = vmatpush1.msra.mxu0 0.0
    %317 = vmatprep.subr.mxu0 0.0
    %318 = vmatpush1.msra.mxu0 0.0
    %319 = vmatprep.subr.mxu0 0.0
    %320 = vmatpush1.msra.mxu0 0.0
    %321 = vmatprep.subr.mxu0 0.0
    %322 = vmatpush1.msra.mxu0 0.0
    %323 = vmatprep.subr.mxu0 0.0
    %324 = vmatpush1.msra.mxu0 0.0
    %325 = vmatprep.subr.mxu0 0.0
    %326 = vmatpush1.msra.mxu0 0.0
    %327 = vmatprep.subr.mxu0 0.0
    %328 = vmatpush1.msra.mxu0 0.0
    %329 = vmatprep.subr.mxu0 0.0
    %330 = vmatpush1.msra.mxu0 0.0
    %331 = vmatprep.subr.mxu0 0.0
    %332 = vmatpush1.msra.mxu0 0.0
    %333 = vmatprep.subr.mxu0 0.0
    %334 = vmatpush1.msra.mxu0 0.0
    %335 = vmatprep.subr.mxu0 0.0
    %336 = vmatpush1.msra.mxu0 0.0
    %337 = vmatprep.subr.mxu0 0.0
    %338 = vmatpush1.msra.mxu0 0.0
    %339 = vmatprep.subr.mxu0 0.0
    %340 = vmatpush1.msra.mxu0 0.0
    %341 = vmatprep.subr.mxu0 0.0
    %342 = vmatpush1.msra.mxu0 0.0
    %343 = vmatprep.subr.mxu0 0.0
    %344 = vmatpush1.msra.mxu0 0.0
    %345 = vmatprep.subr.mxu0 0.0
    %346 = vmatpush1.msra.mxu0 0.0
    %347 = vmatprep.subr.mxu0 0.0
    %348 = vmatpush1.msra.mxu0 0.0
    %349 = vmatprep.subr.mxu0 0.0
    %350 = vmatpush1.msra.mxu0 0.0
    %351 = vmatprep.subr.mxu0 0.0
    %352 = vmatpush1.msra.mxu0 0.0
    %353 = vmatprep.subr.mxu0 0.0
    %354 = vmatpush1.msra.mxu0 0.0
    %355 = vmatprep.subr.mxu0 0.0
    %356 = vmatpush1.msra.mxu0 0.0
    %357 = vmatprep.mubr.f32.mxu0 0.0
    %358 = vmatmul.mubr.f32.gmra.mrb[0].mxu0 %v291
    %v359 = vpop.f32.mrb[0].mxu0
    %v360 = vadd.f32 0.0, %v359
    %v361 = vpop.f32.mrb[0].mxu0
    %v362 = vadd.f32 0.0, %v361
    %363 = vdwg.mxu0
    %v366 = vrot.slane %v360, 7
    %v367 = vrot.slane %v362, 7
    %v370 = vadd.f32 %v173, %v366
    %v371 = vadd.f32 %v175, %v367
    %v372 = vsub.f32 0.0, %v370
    %v373 = vsub.f32 0.0, %v371
    %v374 = vmul.f32 %v372, 1.442695
    %v375 = vpow.pop %v374
    %v376 = vmul.f32 %v373, 1.442695
    %v377 = vpow.pop %v376
    %v378 = vadd.f32 %v375, 1.0
    %v379 = vadd.f32 %v377, 1.0
    %v380 = vrcp.pop %v378
    %v381 = vrcp.pop %v379
    %v382 = vtanh.pop %v371
    %v384 = vrot.slane %v283, 7
    %v386 = vmul.f32 %v380, %v384
    %388 = vrot.lane.b32.xlu0 %v382, 64
    %v389 = vpop.permute.xlu0 %388
    %v391 = vmul.f32 %v380, %v389
    %393 = vrot.lane.b32.xlu0 %v391, 64
    %v394 = vpop.permute.xlu0 %393
    %v396 = vadd.f32 %v386, %v394
    %v397 = vtanh.pop %v396
    %399 = vrot.lane.b32.xlu0 %v397, 64
    %v400 = vpop.permute.xlu0 %399
    %v402 = vmul.f32 %v381, %v400
    %v404 = vrot.slane %v402, 1
    %v406 = vmax.f32 %v289, %v404
    %v407 = vsel %vm177, %v404, 0
    %409 = vmatprep.subr.mxu0 %v64
    %410 = vmatpush1.msra.mxu0 %v63
    %411 = vmatprep.subr.mxu0 %v66
    %412 = vmatpush1.msra.mxu0 %v65
    %413 = vmatprep.subr.mxu0 %v68
    %414 = vmatpush1.msra.mxu0 %v67
    %415 = vmatprep.subr.mxu0 %v70
    %416 = vmatpush1.msra.mxu0 %v69
    %417 = vmatprep.subr.mxu0 %v72
    %418 = vmatpush1.msra.mxu0 %v71
    %419 = vmatprep.subr.mxu0 %v74
    %420 = vmatpush1.msra.mxu0 %v73
    %421 = vmatprep.subr.mxu0 %v76
    %422 = vmatpush1.msra.mxu0 %v75
    %423 = vmatprep.subr.mxu0 %v78
    %424 = vmatpush1.msra.mxu0 %v77
    %425 = vmatprep.subr.mxu0 0.0
    %426 = vmatpush1.msra.mxu0 0.0
    %427 = vmatprep.subr.mxu0 0.0
    %428 = vmatpush1.msra.mxu0 0.0
    %429 = vmatprep.subr.mxu0 0.0
    %430 = vmatpush1.msra.mxu0 0.0
    %431 = vmatprep.subr.mxu0 0.0
    %432 = vmatpush1.msra.mxu0 0.0
    %433 = vmatprep.subr.mxu0 0.0
    %434 = vmatpush1.msra.mxu0 0.0
    %435 = vmatprep.subr.mxu0 0.0
    %436 = vmatpush1.msra.mxu0 0.0
    %437 = vmatprep.subr.mxu0 0.0
    %438 = vmatpush1.msra.mxu0 0.0
    %439 = vmatprep.subr.mxu0 0.0
    %440 = vmatpush1.msra.mxu0 0.0
    %441 = vmatprep.subr.mxu0 0.0
    %442 = vmatpush1.msra.mxu0 0.0
    %443 = vmatprep.subr.mxu0 0.0
    %444 = vmatpush1.msra.mxu0 0.0
    %445 = vmatprep.subr.mxu0 0.0
    %446 = vmatpush1.msra.mxu0 0.0
    %447 = vmatprep.subr.mxu0 0.0
    %448 = vmatpush1.msra.mxu0 0.0
    %449 = vmatprep.subr.mxu0 0.0
    %450 = vmatpush1.msra.mxu0 0.0
    %451 = vmatprep.subr.mxu0 0.0
    %452 = vmatpush1.msra.mxu0 0.0
    %453 = vmatprep.subr.mxu0 0.0
    %454 = vmatpush1.msra.mxu0 0.0
    %455 = vmatprep.subr.mxu0 0.0
    %456 = vmatpush1.msra.mxu0 0.0
    %457 = vmatprep.subr.mxu0 0.0
    %458 = vmatpush1.msra.mxu0 0.0
    %459 = vmatprep.subr.mxu0 0.0
    %460 = vmatpush1.msra.mxu0 0.0
    %461 = vmatprep.subr.mxu0 0.0
    %462 = vmatpush1.msra.mxu0 0.0
    %463 = vmatprep.subr.mxu0 0.0
    %464 = vmatpush1.msra.mxu0 0.0
    %465 = vmatprep.subr.mxu0 0.0
    %466 = vmatpush1.msra.mxu0 0.0
    %467 = vmatprep.subr.mxu0 0.0
    %468 = vmatpush1.msra.mxu0 0.0
    %469 = vmatprep.subr.mxu0 0.0
    %470 = vmatpush1.msra.mxu0 0.0
    %471 = vmatprep.subr.mxu0 0.0
    %472 = vmatpush1.msra.mxu0 0.0
    %473 = vmatprep.mubr.f32.mxu0 0.0
    %474 = vmatmul.mubr.f32.gmra.mrb[0].mxu0 %v407
    %v475 = vpop.f32.mrb[0].mxu0
    %v476 = vadd.f32 0.0, %v475
    %v477 = vpop.f32.mrb[0].mxu0
    %v478 = vadd.f32 0.0, %v477
    %479 = vdwg.mxu0
    %v482 = vrot.slane %v476, 6
    %v483 = vrot.slane %v478, 6
    %v486 = vadd.f32 %v173, %v482
    %v487 = vadd.f32 %v175, %v483
    %v488 = vsub.f32 0.0, %v486
    %v489 = vsub.f32 0.0, %v487
    %v490 = vmul.f32 %v488, 1.442695
    %v491 = vpow.pop %v490
    %v492 = vmul.f32 %v489, 1.442695
    %v493 = vpow.pop %v492
    %v494 = vadd.f32 %v491, 1.0
    %v495 = vadd.f32 %v493, 1.0
    %v496 = vrcp.pop %v494
    %v497 = vrcp.pop %v495
    %v498 = vtanh.pop %v487
    %v500 = vrot.slane %v396, 7
    %v502 = vmul.f32 %v496, %v500
    %504 = vrot.lane.b32.xlu0 %v498, 64
    %v505 = vpop.permute.xlu0 %504
    %v507 = vmul.f32 %v496, %v505
    %509 = vrot.lane.b32.xlu0 %v507, 64
    %v510 = vpop.permute.xlu0 %509
    %v512 = vadd.f32 %v502, %v510
    %v513 = vtanh.pop %v512
    %515 = vrot.lane.b32.xlu0 %v513, 64
    %v516 = vpop.permute.xlu0 %515
    %v518 = vmul.f32 %v497, %v516
    %v520 = vrot.slane %v518, 2
    %v522 = vmax.f32 %v406, %v520
    %v523 = vsel %vm177, %v520, 0
    %525 = vmatprep.subr.mxu0 %v64
    %526 = vmatpush1.msra.mxu0 %v63
    %527 = vmatprep.subr.mxu0 %v66
    %528 = vmatpush1.msra.mxu0 %v65
    %529 = vmatprep.subr.mxu0 %v68
    %530 = vmatpush1.msra.mxu0 %v67
    %531 = vmatprep.subr.mxu0 %v70
    %532 = vmatpush1.msra.mxu0 %v69
    %533 = vmatprep.subr.mxu0 %v72
    %534 = vmatpush1.msra.mxu0 %v71
    %535 = vmatprep.subr.mxu0 %v74
    %536 = vmatpush1.msra.mxu0 %v73
    %537 = vmatprep.subr.mxu0 %v76
    %538 = vmatpush1.msra.mxu0 %v75
    %539 = vmatprep.subr.mxu0 %v78
    %540 = vmatpush1.msra.mxu0 %v77
    %541 = vmatprep.subr.mxu0 0.0
    %542 = vmatpush1.msra.mxu0 0.0
    %543 = vmatprep.subr.mxu0 0.0
    %544 = vmatpush1.msra.mxu0 0.0
    %545 = vmatprep.subr.mxu0 0.0
    %546 = vmatpush1.msra.mxu0 0.0
    %547 = vmatprep.subr.mxu0 0.0
    %548 = vmatpush1.msra.mxu0 0.0
    %549 = vmatprep.subr.mxu0 0.0
    %550 = vmatpush1.msra.mxu0 0.0
    %551 = vmatprep.subr.mxu0 0.0
    %552 = vmatpush1.msra.mxu0 0.0
    %553 = vmatprep.subr.mxu0 0.0
    %554 = vmatpush1.msra.mxu0 0.0
    %555 = vmatprep.subr.mxu0 0.0
    %556 = vmatpush1.msra.mxu0 0.0
    %557 = vmatprep.subr.mxu0 0.0
    %558 = vmatpush1.msra.mxu0 0.0
    %559 = vmatprep.subr.mxu0 0.0
    %560 = vmatpush1.msra.mxu0 0.0
    %561 = vmatprep.subr.mxu0 0.0
    %562 = vmatpush1.msra.mxu0 0.0
    %563 = vmatprep.subr.mxu0 0.0
    %564 = vmatpush1.msra.mxu0 0.0
    %565 = vmatprep.subr.mxu0 0.0
    %566 = vmatpush1.msra.mxu0 0.0
    %567 = vmatprep.subr.mxu0 0.0
    %568 = vmatpush1.msra.mxu0 0.0
    %569 = vmatprep.subr.mxu0 0.0
    %570 = vmatpush1.msra.mxu0 0.0
    %571 = vmatprep.subr.mxu0 0.0
    %572 = vmatpush1.msra.mxu0 0.0
    %573 = vmatprep.subr.mxu0 0.0
    %574 = vmatpush1.msra.mxu0 0.0
    %575 = vmatprep.subr.mxu0 0.0
    %576 = vmatpush1.msra.mxu0 0.0
    %577 = vmatprep.subr.mxu0 0.0
    %578 = vmatpush1.msra.mxu0 0.0
    %579 = vmatprep.subr.mxu0 0.0
    %580 = vmatpush1.msra.mxu0 0.0
    %581 = vmatprep.subr.mxu0 0.0
    %582 = vmatpush1.msra.mxu0 0.0
    %583 = vmatprep.subr.mxu0 0.0
    %584 = vmatpush1.msra.mxu0 0.0
    %585 = vmatprep.subr.mxu0 0.0
    %586 = vmatpush1.msra.mxu0 0.0
    %587 = vmatprep.subr.mxu0 0.0
    %588 = vmatpush1.msra.mxu0 0.0
    %589 = vmatprep.mubr.f32.mxu0 0.0
    %590 = vmatmul.mubr.f32.gmra.mrb[0].mxu0 %v523
    %v591 = vpop.f32.mrb[0].mxu0
    %v592 = vadd.f32 0.0, %v591
    %v593 = vpop.f32.mrb[0].mxu0
    %v594 = vadd.f32 0.0, %v593
    %595 = vdwg.mxu0
    %v598 = vrot.slane %v592, 5
    %v599 = vrot.slane %v594, 5
    %v602 = vadd.f32 %v173, %v598
    %v603 = vadd.f32 %v175, %v599
    %v604 = vsub.f32 0.0, %v602
    %v605 = vsub.f32 0.0, %v603
    %v606 = vmul.f32 %v604, 1.442695
    %v607 = vpow.pop %v606
    %v608 = vmul.f32 %v605, 1.442695
    %v609 = vpow.pop %v608
    %v610 = vadd.f32 %v607, 1.0
    %v611 = vadd.f32 %v609, 1.0
    %v612 = vrcp.pop %v610
    %v613 = vrcp.pop %v611
    %v614 = vtanh.pop %v603
    %v616 = vrot.slane %v512, 7
    %v618 = vmul.f32 %v612, %v616
    %620 = vrot.lane.b32.xlu0 %v614, 64
    %v621 = vpop.permute.xlu0 %620
    %v623 = vmul.f32 %v612, %v621
    %625 = vrot.lane.b32.xlu0 %v623, 64
    %v626 = vpop.permute.xlu0 %625
    %v628 = vadd.f32 %v618, %v626
    %v629 = vtanh.pop %v628
    %631 = vrot.lane.b32.xlu0 %v629, 64
    %v632 = vpop.permute.xlu0 %631
    %v634 = vmul.f32 %v613, %v632
    %v636 = vrot.slane %v634, 3
    %v638 = vmax.f32 %v522, %v636
    %v639 = vsel %vm177, %v636, 0
    %641 = vmatprep.subr.mxu0 %v64
    %642 = vmatpush1.msra.mxu0 %v63
    %643 = vmatprep.subr.mxu0 %v66
    %644 = vmatpush1.msra.mxu0 %v65
    %645 = vmatprep.subr.mxu0 %v68
    %646 = vmatpush1.msra.mxu0 %v67
    %647 = vmatprep.subr.mxu0 %v70
    %648 = vmatpush1.msra.mxu0 %v69
    %649 = vmatprep.subr.mxu0 %v72
    %650 = vmatpush1.msra.mxu0 %v71
    %651 = vmatprep.subr.mxu0 %v74
    %652 = vmatpush1.msra.mxu0 %v73
    %653 = vmatprep.subr.mxu0 %v76
    %654 = vmatpush1.msra.mxu0 %v75
    %655 = vmatprep.subr.mxu0 %v78
    %656 = vmatpush1.msra.mxu0 %v77
    %657 = vmatprep.subr.mxu0 0.0
    %658 = vmatpush1.msra.mxu0 0.0
    %659 = vmatprep.subr.mxu0 0.0
    %660 = vmatpush1.msra.mxu0 0.0
    %661 = vmatprep.subr.mxu0 0.0
    %662 = vmatpush1.msra.mxu0 0.0
    %663 = vmatprep.subr.mxu0 0.0
    %664 = vmatpush1.msra.mxu0 0.0
    %665 = vmatprep.subr.mxu0 0.0
    %666 = vmatpush1.msra.mxu0 0.0
    %667 = vmatprep.subr.mxu0 0.0
    %668 = vmatpush1.msra.mxu0 0.0
    %669 = vmatprep.subr.mxu0 0.0
    %670 = vmatpush1.msra.mxu0 0.0
    %671 = vmatprep.subr.mxu0 0.0
    %672 = vmatpush1.msra.mxu0 0.0
    %673 = vmatprep.subr.mxu0 0.0
    %674 = vmatpush1.msra.mxu0 0.0
    %675 = vmatprep.subr.mxu0 0.0
    %676 = vmatpush1.msra.mxu0 0.0
    %677 = vmatprep.subr.mxu0 0.0
    %678 = vmatpush1.msra.mxu0 0.0
    %679 = vmatprep.subr.mxu0 0.0
    %680 = vmatpush1.msra.mxu0 0.0
    %681 = vmatprep.subr.mxu0 0.0
    %682 = vmatpush1.msra.mxu0 0.0
    %683 = vmatprep.subr.mxu0 0.0
    %684 = vmatpush1.msra.mxu0 0.0
    %685 = vmatprep.subr.mxu0 0.0
    %686 = vmatpush1.msra.mxu0 0.0
    %687 = vmatprep.subr.mxu0 0.0
    %688 = vmatpush1.msra.mxu0 0.0
    %689 = vmatprep.subr.mxu0 0.0
    %690 = vmatpush1.msra.mxu0 0.0
    %691 = vmatprep.subr.mxu0 0.0
    %692 = vmatpush1.msra.mxu0 0.0
    %693 = vmatprep.subr.mxu0 0.0
    %694 = vmatpush1.msra.mxu0 0.0
    %695 = vmatprep.subr.mxu0 0.0
    %696 = vmatpush1.msra.mxu0 0.0
    %697 = vmatprep.subr.mxu0 0.0
    %698 = vmatpush1.msra.mxu0 0.0
    %699 = vmatprep.subr.mxu0 0.0
    %700 = vmatpush1.msra.mxu0 0.0
    %701 = vmatprep.subr.mxu0 0.0
    %702 = vmatpush1.msra.mxu0 0.0
    %703 = vmatprep.subr.mxu0 0.0
    %704 = vmatpush1.msra.mxu0 0.0
    %705 = vmatprep.mubr.f32.mxu0 0.0
    %706 = vmatmul.mubr.f32.gmra.mrb[0].mxu0 %v639
    %v707 = vpop.f32.mrb[0].mxu0
    %v708 = vadd.f32 0.0, %v707
    %v709 = vpop.f32.mrb[0].mxu0
    %v710 = vadd.f32 0.0, %v709
    %711 = vdwg.mxu0
    %v714 = vrot.slane %v708, 4
    %v715 = vrot.slane %v710, 4
    %v718 = vadd.f32 %v173, %v714
    %v719 = vadd.f32 %v175, %v715
    %v720 = vsub.f32 0.0, %v718
    %v721 = vsub.f32 0.0, %v719
    %v722 = vmul.f32 %v720, 1.442695
    %v723 = vpow.pop %v722
    %v724 = vmul.f32 %v721, 1.442695
    %v725 = vpow.pop %v724
    %v726 = vadd.f32 %v723, 1.0
    %v727 = vadd.f32 %v725, 1.0
    %v728 = vrcp.pop %v726
    %v729 = vrcp.pop %v727
    %v730 = vtanh.pop %v719
    %v732 = vrot.slane %v628, 7
    %v734 = vmul.f32 %v728, %v732
    %736 = vrot.lane.b32.xlu0 %v730, 64
    %v737 = vpop.permute.xlu0 %736
    %v739 = vmul.f32 %v728, %v737
    %741 = vrot.lane.b32.xlu0 %v739, 64
    %v742 = vpop.permute.xlu0 %741
    %v744 = vadd.f32 %v734, %v742
    %v745 = vtanh.pop %v744
    %747 = vrot.lane.b32.xlu0 %v745, 64
    %v748 = vpop.permute.xlu0 %747
    %v750 = vmul.f32 %v729, %v748
    %v752 = vrot.slane %v750, 4
    %v754 = vmax.f32 %v638, %v752
    %v755 = vsel %vm177, %v752, 0
    %757 = vmatprep.subr.mxu0 %v64
    %758 = vmatpush1.msra.mxu0 %v63
    %759 = vmatprep.subr.mxu0 %v66
    %760 = vmatpush1.msra.mxu0 %v65
    %761 = vmatprep.subr.mxu0 %v68
    %762 = vmatpush1.msra.mxu0 %v67
    %763 = vmatprep.subr.mxu0 %v70
    %764 = vmatpush1.msra.mxu0 %v69
    %765 = vmatprep.subr.mxu0 %v72
    %766 = vmatpush1.msra.mxu0 %v71
    %767 = vmatprep.subr.mxu0 %v74
    %768 = vmatpush1.msra.mxu0 %v73
    %769 = vmatprep.subr.mxu0 %v76
    %770 = vmatpush1.msra.mxu0 %v75
    %771 = vmatprep.subr.mxu0 %v78
    %772 = vmatpush1.msra.mxu0 %v77
    %773 = vmatprep.subr.mxu0 0.0
    %774 = vmatpush1.msra.mxu0 0.0
    %775 = vmatprep.subr.mxu0 0.0
    %776 = vmatpush1.msra.mxu0 0.0
    %777 = vmatprep.subr.mxu0 0.0
    %778 = vmatpush1.msra.mxu0 0.0
    %779 = vmatprep.subr.mxu0 0.0
    %780 = vmatpush1.msra.mxu0 0.0
    %781 = vmatprep.subr.mxu0 0.0
    %782 = vmatpush1.msra.mxu0 0.0
    %783 = vmatprep.subr.mxu0 0.0
    %784 = vmatpush1.msra.mxu0 0.0
    %785 = vmatprep.subr.mxu0 0.0
    %786 = vmatpush1.msra.mxu0 0.0
    %787 = vmatprep.subr.mxu0 0.0
    %788 = vmatpush1.msra.mxu0 0.0
    %789 = vmatprep.subr.mxu0 0.0
    %790 = vmatpush1.msra.mxu0 0.0
    %791 = vmatprep.subr.mxu0 0.0
    %792 = vmatpush1.msra.mxu0 0.0
    %793 = vmatprep.subr.mxu0 0.0
    %794 = vmatpush1.msra.mxu0 0.0
    %795 = vmatprep.subr.mxu0 0.0
    %796 = vmatpush1.msra.mxu0 0.0
    %797 = vmatprep.subr.mxu0 0.0
    %798 = vmatpush1.msra.mxu0 0.0
    %799 = vmatprep.subr.mxu0 0.0
    %800 = vmatpush1.msra.mxu0 0.0
    %801 = vmatprep.subr.mxu0 0.0
    %802 = vmatpush1.msra.mxu0 0.0
    %803 = vmatprep.subr.mxu0 0.0
    %804 = vmatpush1.msra.mxu0 0.0
    %805 = vmatprep.subr.mxu0 0.0
    %806 = vmatpush1.msra.mxu0 0.0
    %807 = vmatprep.subr.mxu0 0.0
    %808 = vmatpush1.msra.mxu0 0.0
    %809 = vmatprep.subr.mxu0 0.0
    %810 = vmatpush1.msra.mxu0 0.0
    %811 = vmatprep.subr.mxu0 0.0
    %812 = vmatpush1.msra.mxu0 0.0
    %813 = vmatprep.subr.mxu0 0.0
    %814 = vmatpush1.msra.mxu0 0.0
    %815 = vmatprep.subr.mxu0 0.0
    %816 = vmatpush1.msra.mxu0 0.0
    %817 = vmatprep.subr.mxu0 0.0
    %818 = vmatpush1.msra.mxu0 0.0
    %819 = vmatprep.subr.mxu0 0.0
    %820 = vmatpush1.msra.mxu0 0.0
    %821 = vmatprep.mubr.f32.mxu0 0.0
    %822 = vmatmul.mubr.f32.gmra.mrb[0].mxu0 %v755
    %v823 = vpop.f32.mrb[0].mxu0
    %v824 = vadd.f32 0.0, %v823
    %v825 = vpop.f32.mrb[0].mxu0
    %v826 = vadd.f32 0.0, %v825
    %827 = vdwg.mxu0
    %v830 = vrot.slane %v824, 3
    %v831 = vrot.slane %v826, 3
    %v834 = vadd.f32 %v173, %v830
    %v835 = vadd.f32 %v175, %v831
    %v836 = vsub.f32 0.0, %v834
    %v837 = vsub.f32 0.0, %v835
    %v838 = vmul.f32 %v836, 1.442695
    %v839 = vpow.pop %v838
    %v840 = vmul.f32 %v837, 1.442695
    %v841 = vpow.pop %v840
    %v842 = vadd.f32 %v839, 1.0
    %v843 = vadd.f32 %v841, 1.0
    %v844 = vrcp.pop %v842
    %v845 = vrcp.pop %v843
    %v846 = vtanh.pop %v835
    %v848 = vrot.slane %v744, 7
    %v850 = vmul.f32 %v844, %v848
    %852 = vrot.lane.b32.xlu0 %v846, 64
    %v853 = vpop.permute.xlu0 %852
    %v855 = vmul.f32 %v844, %v853
    %857 = vrot.lane.b32.xlu0 %v855, 64
    %v858 = vpop.permute.xlu0 %857
    %v860 = vadd.f32 %v850, %v858
    %v861 = vtanh.pop %v860
    %863 = vrot.lane.b32.xlu0 %v861, 64
    %v864 = vpop.permute.xlu0 %863
    %v866 = vmul.f32 %v845, %v864
    %v868 = vrot.slane %v866, 5
    %v870 = vmax.f32 %v754, %v868
    %v871 = vsel %vm177, %v868, 0
    %873 = vmatprep.subr.mxu0 %v64
    %874 = vmatpush1.msra.mxu0 %v63
    %875 = vmatprep.subr.mxu0 %v66
    %876 = vmatpush1.msra.mxu0 %v65
    %877 = vmatprep.subr.mxu0 %v68
    %878 = vmatpush1.msra.mxu0 %v67
    %879 = vmatprep.subr.mxu0 %v70
    %880 = vmatpush1.msra.mxu0 %v69
    %881 = vmatprep.subr.mxu0 %v72
    %882 = vmatpush1.msra.mxu0 %v71
    %883 = vmatprep.subr.mxu0 %v74
    %884 = vmatpush1.msra.mxu0 %v73
    %885 = vmatprep.subr.mxu0 %v76
    %886 = vmatpush1.msra.mxu0 %v75
    %887 = vmatprep.subr.mxu0 %v78
    %888 = vmatpush1.msra.mxu0 %v77
    %889 = vmatprep.subr.mxu0 0.0
    %890 = vmatpush1.msra.mxu0 0.0
    %891 = vmatprep.subr.mxu0 0.0
    %892 = vmatpush1.msra.mxu0 0.0
    %893 = vmatprep.subr.mxu0 0.0
    %894 = vmatpush1.msra.mxu0 0.0
    %895 = vmatprep.subr.mxu0 0.0
    %896 = vmatpush1.msra.mxu0 0.0
    %897 = vmatprep.subr.mxu0 0.0
    %898 = vmatpush1.msra.mxu0 0.0
    %899 = vmatprep.subr.mxu0 0.0
    %900 = vmatpush1.msra.mxu0 0.0
    %901 = vmatprep.subr.mxu0 0.0
    %902 = vmatpush1.msra.mxu0 0.0
    %903 = vmatprep.subr.mxu0 0.0
    %904 = vmatpush1.msra.mxu0 0.0
    %905 = vmatprep.subr.mxu0 0.0
    %906 = vmatpush1.msra.mxu0 0.0
    %907 = vmatprep.subr.mxu0 0.0
    %908 = vmatpush1.msra.mxu0 0.0
    %909 = vmatprep.subr.mxu0 0.0
    %910 = vmatpush1.msra.mxu0 0.0
    %911 = vmatprep.subr.mxu0 0.0
    %912 = vmatpush1.msra.mxu0 0.0
    %913 = vmatprep.subr.mxu0 0.0
    %914 = vmatpush1.msra.mxu0 0.0
    %915 = vmatprep.subr.mxu0 0.0
    %916 = vmatpush1.msra.mxu0 0.0
    %917 = vmatprep.subr.mxu0 0.0
    %918 = vmatpush1.msra.mxu0 0.0
    %919 = vmatprep.subr.mxu0 0.0
    %920 = vmatpush1.msra.mxu0 0.0
    %921 = vmatprep.subr.mxu0 0.0
    %922 = vmatpush1.msra.mxu0 0.0
    %923 = vmatprep.subr.mxu0 0.0
    %924 = vmatpush1.msra.mxu0 0.0
    %925 = vmatprep.subr.mxu0 0.0
    %926 = vmatpush1.msra.mxu0 0.0
    %927 = vmatprep.subr.mxu0 0.0
    %928 = vmatpush1.msra.mxu0 0.0
    %929 = vmatprep.subr.mxu0 0.0
    %930 = vmatpush1.msra.mxu0 0.0
    %931 = vmatprep.subr.mxu0 0.0
    %932 = vmatpush1.msra.mxu0 0.0
    %933 = vmatprep.subr.mxu0 0.0
    %934 = vmatpush1.msra.mxu0 0.0
    %935 = vmatprep.subr.mxu0 0.0
    %936 = vmatpush1.msra.mxu0 0.0
    %937 = vmatprep.mubr.f32.mxu0 0.0
    %938 = vmatmul.mubr.f32.gmra.mrb[0].mxu0 %v871
    %v939 = vpop.f32.mrb[0].mxu0
    %v940 = vadd.f32 0.0, %v939
    %v941 = vpop.f32.mrb[0].mxu0
    %v942 = vadd.f32 0.0, %v941
    %943 = vdwg.mxu0
    %v946 = vrot.slane %v940, 2
    %v947 = vrot.slane %v942, 2
    %v950 = vadd.f32 %v173, %v946
    %v951 = vadd.f32 %v175, %v947
    %v952 = vsub.f32 0.0, %v950
    %v953 = vsub.f32 0.0, %v951
    %v954 = vmul.f32 %v952, 1.442695
    %v955 = vpow.pop %v954
    %v956 = vmul.f32 %v953, 1.442695
    %v957 = vpow.pop %v956
    %v958 = vadd.f32 %v955, 1.0
    %v959 = vadd.f32 %v957, 1.0
    %v960 = vrcp.pop %v958
    %v961 = vrcp.pop %v959
    %v962 = vtanh.pop %v951
    %v964 = vrot.slane %v860, 7
    %v966 = vmul.f32 %v960, %v964
    %968 = vrot.lane.b32.xlu0 %v962, 64
    %v969 = vpop.permute.xlu0 %968
    %v971 = vmul.f32 %v960, %v969
    %973 = vrot.lane.b32.xlu0 %v971, 64
    %v974 = vpop.permute.xlu0 %973
    %v976 = vadd.f32 %v966, %v974
    %v977 = vtanh.pop %v976
    %979 = vrot.lane.b32.xlu0 %v977, 64
    %v980 = vpop.permute.xlu0 %979
    %v982 = vmul.f32 %v961, %v980
    %v984 = vrot.slane %v982, 6
    %v986 = vmax.f32 %v870, %v984
    %v987 = vsel %vm177, %v984, 0
    %989 = vmatprep.subr.mxu0 %v64
    %990 = vmatpush1.msra.mxu0 %v63
    %991 = vmatprep.subr.mxu0 %v66
    %992 = vmatpush1.msra.mxu0 %v65
    %993 = vmatprep.subr.mxu0 %v68
    %994 = vmatpush1.msra.mxu0 %v67
    %995 = vmatprep.subr.mxu0 %v70
    %996 = vmatpush1.msra.mxu0 %v69
    %997 = vmatprep.subr.mxu0 %v72
    %998 = vmatpush1.msra.mxu0 %v71
    %999 = vmatprep.subr.mxu0 %v74
    %1000 = vmatpush1.msra.mxu0 %v73
    %1001 = vmatprep.subr.mxu0 %v76
    %1002 = vmatpush1.msra.mxu0 %v75
    %1003 = vmatprep.subr.mxu0 %v78
    %1004 = vmatpush1.msra.mxu0 %v77
    %1005 = vmatprep.subr.mxu0 0.0
    %1006 = vmatpush1.msra.mxu0 0.0
    %1007 = vmatprep.subr.mxu0 0.0
    %1008 = vmatpush1.msra.mxu0 0.0
    %1009 = vmatprep.subr.mxu0 0.0
    %1010 = vmatpush1.msra.mxu0 0.0
    %1011 = vmatprep.subr.mxu0 0.0
    %1012 = vmatpush1.msra.mxu0 0.0
    %1013 = vmatprep.subr.mxu0 0.0
    %1014 = vmatpush1.msra.mxu0 0.0
    %1015 = vmatprep.subr.mxu0 0.0
    %1016 = vmatpush1.msra.mxu0 0.0
    %1017 = vmatprep.subr.mxu0 0.0
    %1018 = vmatpush1.msra.mxu0 0.0
    %1019 = vmatprep.subr.mxu0 0.0
    %1020 = vmatpush1.msra.mxu0 0.0
    %1021 = vmatprep.subr.mxu0 0.0
    %1022 = vmatpush1.msra.mxu0 0.0
    %1023 = vmatprep.subr.mxu0 0.0
    %1024 = vmatpush1.msra.mxu0 0.0
    %1025 = vmatprep.subr.mxu0 0.0
    %1026 = vmatpush1.msra.mxu0 0.0
    %1027 = vmatprep.subr.mxu0 0.0
    %1028 = vmatpush1.msra.mxu0 0.0
    %1029 = vmatprep.subr.mxu0 0.0
    %1030 = vmatpush1.msra.mxu0 0.0
    %1031 = vmatprep.subr.mxu0 0.0
    %1032 = vmatpush1.msra.mxu0 0.0
    %1033 = vmatprep.subr.mxu0 0.0
    %1034 = vmatpush1.msra.mxu0 0.0
    %1035 = vmatprep.subr.mxu0 0.0
    %1036 = vmatpush1.msra.mxu0 0.0
    %1037 = vmatprep.subr.mxu0 0.0
    %1038 = vmatpush1.msra.mxu0 0.0
    %1039 = vmatprep.subr.mxu0 0.0
    %1040 = vmatpush1.msra.mxu0 0.0
    %1041 = vmatprep.subr.mxu0 0.0
    %1042 = vmatpush1.msra.mxu0 0.0
    %1043 = vmatprep.subr.mxu0 0.0
    %1044 = vmatpush1.msra.mxu0 0.0
    %1045 = vmatprep.subr.mxu0 0.0
    %1046 = vmatpush1.msra.mxu0 0.0
    %1047 = vmatprep.subr.mxu0 0.0
    %1048 = vmatpush1.msra.mxu0 0.0
    %1049 = vmatprep.subr.mxu0 0.0
    %1050 = vmatpush1.msra.mxu0 0.0
    %1051 = vmatprep.subr.mxu0 0.0
    %1052 = vmatpush1.msra.mxu0 0.0
    %1053 = vmatprep.mubr.f32.mxu0 0.0
    %1054 = vmatmul.mubr.f32.gmra.mrb[0].mxu0 %v987
    %v1055 = vpop.f32.mrb[0].mxu0
    %v1056 = vadd.f32 0.0, %v1055
    %v1057 = vpop.f32.mrb[0].mxu0
    %v1058 = vadd.f32 0.0, %v1057
    %1059 = vdwg.mxu0
    %v1062 = vrot.slane %v1056, 1
    %v1063 = vrot.slane %v1058, 1
    %v1066 = vadd.f32 %v173, %v1062
    %v1067 = vadd.f32 %v175, %v1063
    %v1068 = vsub.f32 0.0, %v1066
    %v1069 = vsub.f32 0.0, %v1067
    %v1070 = vmul.f32 %v1068, 1.442695
    %v1071 = vpow.pop %v1070
    %v1072 = vmul.f32 %v1069, 1.442695
    %v1073 = vpow.pop %v1072
    %v1074 = vadd.f32 %v1071, 1.0
    %v1075 = vadd.f32 %v1073, 1.0
    %v1076 = vrcp.pop %v1074
    %v1077 = vrcp.pop %v1075
    %v1078 = vtanh.pop %v1067
    %v1080 = vrot.slane %v976, 7
    %v1082 = vmul.f32 %v1076, %v1080
    %1084 = vrot.lane.b32.xlu0 %v1078, 64
    %v1085 = vpop.permute.xlu0 %1084
    %v1087 = vmul.f32 %v1076, %v1085
    %1089 = vrot.lane.b32.xlu0 %v1087, 64
    %v1090 = vpop.permute.xlu0 %1089
    %v1092 = vadd.f32 %v1082, %v1090
    %v1093 = vtanh.pop %v1092
    %1095 = vrot.lane.b32.xlu0 %v1093, 64
    %v1096 = vpop.permute.xlu0 %1095
    %v1098 = vmul.f32 %v1077, %v1096
    %v1100 = vrot.slane %v1098, 7
    %v1102 = vmax.f32 %v986, %v1100
    %vm1103 = vcmask 516096
    %1104 = vst.msk [vmem:[#allocation8] sm:$0x1] %vm1103, %v1102
    // Predicated region
    $region38: #{tpu_custom_call.1} parent=1 // pred_check
      _
    $region39: #{tpu_custom_call.1} parent=1 // pred_check_branch
      %1106 = sbr.rel (0) target = $region41
    $region40: #{tpu_custom_call.1} parent=1 // pred_region
      %s1108 = ssub.s32 16, 16
      %1109 = vsyncadd [#allocation4], %s1108
      %s1111 = sshll.u32 [#allocation8], 4
      %s1112 = int_to_ptr.vmem [resolvable:$true] %s1111
      %1114 = dma.vmem_to_hbm [thread:$0]  %s1112, 16, %s6, [#allocation4]
    $region41: #{tpu_custom_call.1} parent=1 // pred_fallthru
      _
    // Predicated region
    $region42: #{tpu_custom_call.1} parent=1 // pred_check
      _
    $region43: #{tpu_custom_call.1} parent=1 // pred_check_branch
      %1116 = sbr.rel (0) target = $region45
    $region44: #{tpu_custom_call.1} parent=1 // pred_region
      %1117 = dma.done [#allocation4], 16
    $region45: #{tpu_custom_call.1} parent=1 // pred_fallthru
      _
    %1118 = vsyncpa [#allocation3], 1
    %1119 = vsyncpa [#allocation6], 1
    %1120 = vsyncpa [#allocation4], 1

</llo_original>
